<compile_context>
chip_gen: v6e
topology: v6e:2x2x1
jax: 0.10.0
libtpu: 0.0.40
codegen_flags: <defaults>
</compile_context>

<pallas_src>
import functools

import jax
import jax.numpy as jnp
import numpy as np
from jax import lax
from jax.experimental import pallas as pl
from jax.experimental.pallas import tpu as pltpu

EPS = 1e-8          # matches the PyTorch module's self.eps
NORM_EPS = 1e-12    # guards rsqrt against zero-norm feature rows

# Column layout of the packed per-row accumulator scratch (tq, 8).
_M, _L, _SPOS, _CNT, _NPW = 0, 1, 2, 3, 4


def _infonce_kernel(scale_ref, nkey_ref, img_ref, txt_ref, lab_ref,
                    out_ref, img_n_sc, acc_sc,
                    *, txt_prenormalized: bool, mask_keys: bool, matmul_dtype):
    # scale_ref : SMEM (1,) f32     exp(temperature)
    # nkey_ref  : SMEM (1,) i32     true (unpadded) number of key columns
    # img_ref   : VMEM (TQ, D)      image-feature rows (resident across ki)
    # txt_ref   : VMEM (TK, D)      text-feature rows (bf16 if pre-normalized)
    # lab_ref   : VMEM (TQ, TK)     labels tile
    # out_ref   : VMEM (TQ, 2) f32  [:,0]=sum_pos -log p, [:,1]=labels.sum
    # img_n_sc  : VMEM (TQ, D)      normalized + scale-folded image rows (MXU dtype)
    # acc_sc    : VMEM (TQ, 8) f32  packed per-row accumulators
    ki = pl.program_id(1)
    tq = acc_sc.shape[0]

    @pl.when(ki == 0)
    def _init():
        acc_sc[...] = jnp.zeros(acc_sc.shape, acc_sc.dtype)
        acc_sc[:, _M:_M + 1] = jnp.full((tq, 1), -jnp.inf, acc_sc.dtype)
        # Hoisted image normalization: done once per query tile, reused for all
        # key tiles.  exp(temperature) is folded into the image row scale so no
        # extra multiply ever touches the (TQ, TK) logits tile.
        img = img_ref[...].astype(jnp.float32)
        inv = lax.rsqrt(jnp.sum(img * img, axis=-1, keepdims=True) + NORM_EPS)
        img_n_sc[...] = (img * (scale_ref[0] * inv)).astype(img_n_sc.dtype)

    if txt_prenormalized:
        txt_n = txt_ref[...].astype(matmul_dtype)
    else:
        txt = txt_ref[...].astype(jnp.float32)
        inv_t = lax.rsqrt(jnp.sum(txt * txt, axis=-1, keepdims=True) + NORM_EPS)
        txt_n = (txt * inv_t).astype(matmul_dtype)

    # (TQ, TK) logits tile on the MXU: bf16 operands, f32 accumulation; both
    # operands contract their last dim so text rows need no explicit transpose.
    logits = lax.dot_general(
        img_n_sc[...], txt_n,
        dimension_numbers=(((1,), (1,)), ((), ())),
        preferred_element_type=jnp.float32)

    if mask_keys:
        # Exclude padded key columns from the log-sum-exp (their labels are 0,
        # so they never touch the positive statistics).
        tk = logits.shape[1]
        col = ki * tk + lax.broadcasted_iota(jnp.int32, (1, tk), 1)
        logits = jnp.where(col < nkey_ref[0], logits, -jnp.inf)

    lab = lab_ref[...]
    posmask = lab != 0

    # ---- Online log-sum-exp across key tiles ----
    m_prev = acc_sc[:, _M:_M + 1]
    m_new = jnp.maximum(m_prev, jnp.max(logits, axis=-1, keepdims=True))
    p = jnp.exp(logits - m_new)
    alpha = jnp.exp(m_prev - m_new)            # 0 on the first key tile
    acc_sc[:, _L:_L + 1] = (alpha * acc_sc[:, _L:_L + 1]
                            + jnp.sum(p, axis=-1, keepdims=True))
    acc_sc[:, _M:_M + 1] = m_new

    # ---- Positive-entry statistics (mask = labels != 0, weight = labels.sum) ----
    acc_sc[:, _SPOS:_SPOS + 1] += jnp.sum(jnp.where(posmask, logits, 0.0),
                                          axis=-1, keepdims=True)
    acc_sc[:, _CNT:_CNT + 1] += jnp.sum(posmask.astype(jnp.float32),
                                        axis=-1, keepdims=True)
    acc_sc[:, _NPW:_NPW + 1] += jnp.sum(lab.astype(jnp.float32),
                                        axis=-1, keepdims=True)

    @pl.when(ki == pl.num_programs(1) - 1)
    def _finalize():
        lse = acc_sc[:, _M:_M + 1] + jnp.log(acc_sc[:, _L:_L + 1])
        # sum_{j in positives} (lse_i - logit_ij) = cnt_i * lse_i - spos_i
        out_ref[:, 0:1] = acc_sc[:, _CNT:_CNT + 1] * lse - acc_sc[:, _SPOS:_SPOS + 1]
        out_ref[:, 1:2] = acc_sc[:, _NPW:_NPW + 1]


_TQ_CANDIDATES = (1024, 512, 256, 128, 64, 32, 16, 8)
_TK_CANDIDATES = (256, 128)


def _pick_tq(n):
    # Prefer the largest aligned query tile that still leaves >= 2 tiles, so the
    # "parallel" grid axis can shard across both v7x TensorCores.
    for c in _TQ_CANDIDATES:
        if n % c == 0 and n // c >= 2:
            return c
    for c in _TQ_CANDIDATES:          # small-batch fallback: a single tile
        if n % c == 0:
            return c
    return n


def _pick_tk(n):
    # tk beyond 256 only inflates the (tq, tk) f32 temporaries / vld-vst
    # pressure without improving arithmetic intensity.
    for c in _TK_CANDIDATES:
        if n % c == 0:
            return c
    return n


def _pad_batch(b):
    if b <= 128:
        return max(8, -(-b // 8) * 8)
    return -(-b // 128) * 128


def contrastive_loss_infonce(image_features, text_features, labels, temperature,
                             *, matmul_dtype=jnp.bfloat16,
                             prenormalize_text=None):
    """Forward pass of ContrastiveLossInfoNCE.

    image_features: [B, D], text_features: [B, D], labels: [B, B]
    (mask = labels != 0, per-row weight = labels.sum), temperature: scalar.

    The kernel casts internally, so for lowest HBM traffic callers may pass
    text_features in bf16 and labels as int8/bool.
    """
    B, D = image_features.shape
    assert text_features.shape == (B, D)
    assert labels.shape == (B, B)

    # Pad the batch so all tiles stay (8,128)-aligned.  Padded query rows carry
    # zero labels (excluded from the mean); padded key columns are masked out of
    # the log-sum-exp inside the kernel.
    Bp = _pad_batch(B)
    mask_keys = Bp != B
    if mask_keys:
        pad = Bp - B
        image_features = jnp.pad(image_features, ((0, pad), (0, 0)))
        text_features = jnp.pad(text_features, ((0, pad), (0, 0)))
        labels = jnp.pad(labels, ((0, pad), (0, pad)))

    tq = _pick_tq(Bp)
    tk = _pick_tk(Bp)
    nq = Bp // tq
    nk = Bp // tk

    # When text tiles would be re-fetched (and re-normalized) for several query
    # tiles, normalize once here in f32 and stream them to the kernel in the MXU
    # dtype (halves the nq-fold text HBM stream).
    if prenormalize_text is None:
        prenormalize_text = nq >= 2
    if prenormalize_text:
        txt32 = text_features.astype(jnp.float32)
        inv = lax.rsqrt(jnp.sum(txt32 * txt32, axis=-1, keepdims=True) + NORM_EPS)
        text_in = (txt32 * inv).astype(matmul_dtype)
    else:
        text_in = text_features

    scale = jnp.exp(jnp.asarray(temperature, jnp.float32)).reshape((1,))
    nkeys = jnp.asarray([B], jnp.int32)

    kernel = functools.partial(
        _infonce_kernel,
        txt_prenormalized=prenormalize_text,
        mask_keys=mask_keys,
        matmul_dtype=matmul_dtype)

    def _isz(dt):
        return jnp.dtype(dt).itemsize

    # Rough per-core VMEM budget: double-buffered BlockSpec tiles + scratch +
    # a handful of in-flight (tq, tk) f32 temporaries.  Clamp at 56 MiB so it
    # stays inside v7x's 64 MiB physical VMEM; v5e/v6e have 128 MiB physical.
    vmem_est = (2 * tq * D * _isz(image_features.dtype)
                + 2 * tk * D * _isz(text_in.dtype)
                + 2 * tq * tk * _isz(labels.dtype)
                + tq * D * _isz(matmul_dtype)
                + tq * 128 * 4 + 2 * tq * 2 * 4
                + 8 * tq * tk * 4)
    vmem_limit = int(min(max(2 * vmem_est, 32 * 1024 * 1024), 56 * 1024 * 1024))

    grid_spec = pltpu.PrefetchScalarGridSpec(
        num_scalar_prefetch=0,
        grid=(nq, nk),
        in_specs=[
            pl.BlockSpec(memory_space=pltpu.MemorySpace.SMEM),   # exp(temperature)
            pl.BlockSpec(memory_space=pltpu.MemorySpace.SMEM),   # true key count
            pl.BlockSpec((tq, D), lambda qi, ki: (qi, 0)),       # image rows
            pl.BlockSpec((tk, D), lambda qi, ki: (ki, 0)),       # text rows
            pl.BlockSpec((tq, tk), lambda qi, ki: (qi, ki)),     # labels tile
        ],
        out_specs=pl.BlockSpec((tq, 2), lambda qi, ki: (qi, 0)),  # [nll, pos-weight]
        scratch_shapes=[
            pltpu.VMEM((tq, D), matmul_dtype),   # hoisted normalized image tile
            pltpu.VMEM((tq, 8), jnp.float32),    # packed per-row accumulators
        ],
    )

    out = pl.pallas_call(
        kernel,
        grid_spec=grid_spec,
        out_shape=jax.ShapeDtypeStruct((Bp, 2), jnp.float32),
        compiler_params=pltpu.CompilerParams(
            dimension_semantics=("parallel", "arbitrary"),
            vmem_limit_bytes=vmem_limit),
    )(scale, nkeys, image_features, text_in, labels)

    # O(B) scalar epilogue: mean over valid images of (nll_sum / labels.sum).
    nll = out[:B, 0]
    npw = out[:B, 1]
    per_image = nll / (npw + EPS)
    valid = npw > 0.0
    n_valid = jnp.sum(valid.astype(jnp.float32))
    total = jnp.sum(jnp.where(valid, per_image, 0.0))
    return jnp.where(n_valid > 0.0, total / jnp.maximum(n_valid, 1.0),
                     jnp.float32(0.0))


# ----------------------------- references ----------------------------------

def _reference_fp32(image_features, text_features, labels, temperature):
    """Direct float32 port of the PyTorch forward."""
    img = image_features.astype(jnp.float32)
    txt = text_features.astype(jnp.float32)
    img = img / jnp.linalg.norm(img, axis=-1, keepdims=True)
    txt = txt / jnp.linalg.norm(txt, axis=-1, keepdims=True)
    logits = jnp.exp(jnp.asarray(temperature, jnp.float32)) * (img @ txt.T)
    logp = jax.nn.log_softmax(logits, axis=-1)
    mask = labels != 0
    nll = -jnp.sum(jnp.where(mask, logp, 0.0), axis=1)
    npos = jnp.sum(labels.astype(jnp.float32), axis=1)
    valid = npos > 0
    per = nll / (npos + EPS)
    nvalid = jnp.sum(valid.astype(jnp.float32))
    total = jnp.sum(jnp.where(valid, per, 0.0))
    return jnp.where(nvalid > 0, total / jnp.maximum(nvalid, 1.0), 0.0)


def _reference_matched(image_features, text_features, labels, temperature,
                       matmul_dtype=jnp.bfloat16):
    """Same precision choices as the kernel (f32 norm, bf16 MXU operands, f32 LSE)."""
    img = image_features.astype(jnp.float32)
    txt = text_features.astype(jnp.float32)
    scale = jnp.exp(jnp.asarray(temperature, jnp.float32))
    img_n = (img * (scale * lax.rsqrt(
        jnp.sum(img * img, axis=-1, keepdims=True) + NORM_EPS))).astype(matmul_dtype)
    txt_n = (txt * lax.rsqrt(
        jnp.sum(txt * txt, axis=-1, keepdims=True) + NORM_EPS)).astype(matmul_dtype)
    logits = lax.dot_general(img_n, txt_n, (((1,), (1,)), ((), ())),
                             preferred_element_type=jnp.float32)
    logp = jax.nn.log_softmax(logits, axis=-1)
    mask = labels != 0
    nll = -jnp.sum(jnp.where(mask, logp, 0.0), axis=1)
    npos = jnp.sum(labels.astype(jnp.float32), axis=1)
    valid = npos > 0
    per = nll / (npos + EPS)
    nvalid = jnp.sum(valid.astype(jnp.float32))
    total = jnp.sum(jnp.where(valid, per, 0.0))
    return jnp.where(nvalid > 0, total / jnp.maximum(nvalid, 1.0), 0.0)


if __name__ == "__main__":
    key = jax.random.PRNGKey(0)
    # deterministic parameter init, matching nn.Parameter(ones([]) * log(1/0.07))
    temperature = jnp.asarray(np.log(1.0 / 0.07), dtype=jnp.float32)

    def run_case(B, D, label_p=0.5, zero_row=None):
        k1, k2, k3 = jax.random.split(jax.random.fold_in(key, B), 3)
        img = jax.random.normal(k1, (B, D), dtype=jnp.float32)
        txt = jax.random.normal(k2, (B, D), dtype=jnp.float32)
        lab = (jax.random.uniform(k3, (B, B)) < label_p).astype(jnp.float32)
        if zero_row is not None:
            lab = lab.at[zero_row, :].set(0.0)   # one image with no positives
        loss = contrastive_loss_infonce(img, txt, lab, temperature)
        jax.block_until_ready(loss)
        ref_m = _reference_matched(img, txt, lab, temperature)
        ref_f = _reference_fp32(img, txt, lab, temperature)
        assert np.allclose(np.asarray(loss), np.asarray(ref_m),
                           rtol=1e-4, atol=1e-4), (B, loss, ref_m)
        # bf16 MXU operands vs full-f32 reference: deliberate precision trade-off
        assert np.allclose(np.asarray(loss), np.asarray(ref_f),
                           rtol=3e-2, atol=3e-2), (B, loss, ref_f)
        return loss

    # Module docstring shapes are [B, 512].
    run_case(8, 512, label_p=0.5, zero_row=3)   # single tile, in-kernel txt norm
    run_case(384, 512, label_p=0.3)             # multi query+key tiles, pre-normed bf16 txt
    run_case(12, 512, label_p=0.4)              # non-aligned B -> padding + key masking
    print("KERNEL_OK")
</pallas_src>

<mosaic_0001>
module attributes {stable_mosaic.version = 11 : i64} {
  func.func @_infonce_kernel(%arg0: i32, %arg1: i32, %arg2: memref<1xf32, #tpu.memory_space<smem>>, %arg3: memref<1xi32, #tpu.memory_space<smem>>, %arg4: memref<8x512xf32, #tpu.memory_space<vmem>>, %arg5: memref<8x512xf32, #tpu.memory_space<vmem>>, %arg6: memref<8x8xf32, #tpu.memory_space<vmem>>, %arg7: memref<8x2xf32, #tpu.memory_space<vmem>>, %arg8: memref<8x512xbf16, #tpu.memory_space<vmem>>, %arg9: memref<8x8xf32, #tpu.memory_space<vmem>>) attributes {dimension_semantics = [#tpu.dimension_semantics<parallel>, #tpu.dimension_semantics<arbitrary>], iteration_bounds = array<i64: 1, 1>, scalar_prefetch = 0 : i64, scratch_operands = 2 : i64, tpu.core_type = #tpu.core_type<tc>, window_params = [{transform_indices = @transform_0, window_bounds = array<i64: 1>}, {transform_indices = @transform_1, window_bounds = array<i64: 1>}, {transform_indices = @transform_2, window_bounds = array<i64: 8, 512>}, {transform_indices = @transform_3, window_bounds = array<i64: 8, 512>}, {transform_indices = @transform_4, window_bounds = array<i64: 8, 8>}, {transform_indices = @transform_5, window_bounds = array<i64: 8, 2>}]} {
    %c0_i32 = arith.constant 0 : i32
    %0 = arith.cmpi eq, %arg1, %c0_i32 : i32
    %1 = arith.extui %0 : i1 to i32
    %c0_i32_0 = arith.constant 0 : i32
    %2 = arith.cmpi ne, %1, %c0_i32_0 : i32
    scf.if %2 {
      %cst_33 = arith.constant 0.000000e+00 : f32
      %56 = vector.broadcast %cst_33 : f32 to vector<8x8xf32>
      %c0_34 = arith.constant 0 : index
      %c0_35 = arith.constant 0 : index
      %57 = vector.load %arg9[%c0_34, %c0_35] : memref<8x8xf32, #tpu.memory_space<vmem>>, vector<8x8xf32>
      tpu.vector_store %arg9[%c0_34, %c0_35], %56 {strides = array<i32>} : memref<8x8xf32, #tpu.memory_space<vmem>>, vector<8x8xf32>,
      %cst_36 = arith.constant 0xFF800000 : f32
      %58 = vector.broadcast %cst_36 : f32 to vector<8x1xf32>
      %c0_37 = arith.constant 0 : index
      %c0_38 = arith.constant 0 : index
      %59 = vector.load %arg9[%c0_37, %c0_38] : memref<8x8xf32, #tpu.memory_space<vmem>>, vector<8x1xf32>
      tpu.vector_store %arg9[%c0_37, %c0_38], %58 {strides = array<i32>} : memref<8x8xf32, #tpu.memory_space<vmem>>, vector<8x1xf32>,
      %c0_39 = arith.constant 0 : index
      %c0_40 = arith.constant 0 : index
      %60 = vector.load %arg4[%c0_39, %c0_40] : memref<8x512xf32, #tpu.memory_space<vmem>>, vector<8x512xf32>
      %61 = arith.mulf %60, %60 : vector<8x512xf32>
      %cst_41 = arith.constant dense<0.000000e+00> : vector<8xf32>
      %62 = vector.multi_reduction <add>, %61, %cst_41 [1] : vector<8x512xf32> to vector<8xf32>
      %63 = vector.shape_cast %62 : vector<8xf32> to vector<8x1xf32>
      %cst_42 = arith.constant 9.99999996E-13 : f32
      %64 = vector.broadcast %cst_42 : f32 to vector<8x1xf32>
      %65 = arith.addf %63, %64 : vector<8x1xf32>
      %66 = math.rsqrt %65 : vector<8x1xf32>
      %c0_43 = arith.constant 0 : index
      %67 = memref.load %arg2[%c0_43] : memref<1xf32, #tpu.memory_space<smem>>
      %68 = vector.broadcast %67 : f32 to vector<8x1xf32>
      %69 = arith.mulf %68, %66 : vector<8x1xf32>
      %70 = vector.broadcast %69 : vector<8x1xf32> to vector<8x512xf32>
      %71 = arith.mulf %60, %70 : vector<8x512xf32>
      %72 = arith.truncf %71 : vector<8x512xf32> to vector<8x512xbf16>
      %c0_44 = arith.constant 0 : index
      %c0_45 = arith.constant 0 : index
      %73 = vector.load %arg8[%c0_44, %c0_45] : memref<8x512xbf16, #tpu.memory_space<vmem>>, vector<8x512xbf16>
      tpu.vector_store %arg8[%c0_44, %c0_45], %72 {strides = array<i32>} : memref<8x512xbf16, #tpu.memory_space<vmem>>, vector<8x512xbf16>,
    } else {
    }
    %c0 = arith.constant 0 : index
    %c0_1 = arith.constant 0 : index
    %3 = vector.load %arg5[%c0, %c0_1] : memref<8x512xf32, #tpu.memory_space<vmem>>, vector<8x512xf32>
    %4 = arith.mulf %3, %3 : vector<8x512xf32>
    %cst = arith.constant dense<0.000000e+00> : vector<8xf32>
    %5 = vector.multi_reduction <add>, %4, %cst [1] : vector<8x512xf32> to vector<8xf32>
    %6 = vector.shape_cast %5 : vector<8xf32> to vector<8x1xf32>
    %cst_2 = arith.constant 9.99999996E-13 : f32
    %7 = vector.broadcast %cst_2 : f32 to vector<8x1xf32>
    %8 = arith.addf %6, %7 : vector<8x1xf32>
    %9 = math.rsqrt %8 : vector<8x1xf32>
    %10 = vector.broadcast %9 : vector<8x1xf32> to vector<8x512xf32>
    %11 = arith.mulf %3, %10 : vector<8x512xf32>
    %12 = arith.truncf %11 : vector<8x512xf32> to vector<8x512xbf16>
    %c0_3 = arith.constant 0 : index
    %c0_4 = arith.constant 0 : index
    %13 = vector.load %arg8[%c0_3, %c0_4] : memref<8x512xbf16, #tpu.memory_space<vmem>>, vector<8x512xbf16>
    %cst_5 = arith.constant dense<0.000000e+00> : vector<8x8xf32>
    %14 = tpu.matmul %13, %12, %cst_5 {dimension_numbers = #tpu.dot_dimension_numbers<[1], [1], [0], [0], [0, 0, 1, 0], [], []>} : vector<8x512xbf16>, vector<8x512xbf16>, vector<8x8xf32> -> vector<8x8xf32>
    %c0_6 = arith.constant 0 : index
    %c0_7 = arith.constant 0 : index
    %15 = vector.load %arg6[%c0_6, %c0_7] : memref<8x8xf32, #tpu.memory_space<vmem>>, vector<8x8xf32>
    %cst_8 = arith.constant 0.000000e+00 : f32
    %16 = vector.broadcast %cst_8 : f32 to vector<8x8xf32>
    %17 = arith.cmpf one, %15, %16 : vector<8x8xf32>
    %c0_9 = arith.constant 0 : index
    %c0_10 = arith.constant 0 : index
    %18 = vector.load %arg9[%c0_9, %c0_10] : memref<8x8xf32, #tpu.memory_space<vmem>>, vector<8x1xf32>
    %cst_11 = arith.constant dense<0xFF800000> : vector<8xf32>
    %19 = vector.multi_reduction <maximumf>, %14, %cst_11 [1] : vector<8x8xf32> to vector<8xf32>
    %20 = vector.shape_cast %19 : vector<8xf32> to vector<8x1xf32>
    %21 = arith.maximumf %18, %20 : vector<8x1xf32>
    %22 = vector.broadcast %21 : vector<8x1xf32> to vector<8x8xf32>
    %23 = arith.subf %14, %22 : vector<8x8xf32>
    %24 = math.exp %23 : vector<8x8xf32>
    %25 = arith.subf %18, %21 : vector<8x1xf32>
    %26 = math.exp %25 : vector<8x1xf32>
    %c0_12 = arith.constant 0 : index
    %c1 = arith.constant 1 : index
    %27 = vector.load %arg9[%c0_12, %c1] : memref<8x8xf32, #tpu.memory_space<vmem>>, vector<8x1xf32>
    %28 = arith.mulf %26, %27 : vector<8x1xf32>
    %cst_13 = arith.constant dense<0.000000e+00> : vector<8xf32>
    %29 = vector.multi_reduction <add>, %24, %cst_13 [1] : vector<8x8xf32> to vector<8xf32>
    %30 = vector.shape_cast %29 : vector<8xf32> to vector<8x1xf32>
    %31 = arith.addf %28, %30 : vector<8x1xf32>
    %c0_14 = arith.constant 0 : index
    %c1_15 = arith.constant 1 : index
    %32 = vector.load %arg9[%c0_14, %c1_15] : memref<8x8xf32, #tpu.memory_space<vmem>>, vector<8x1xf32>
    tpu.vector_store %arg9[%c0_14, %c1_15], %31 {strides = array<i32>} : memref<8x8xf32, #tpu.memory_space<vmem>>, vector<8x1xf32>,
    %c0_16 = arith.constant 0 : index
    %c0_17 = arith.constant 0 : index
    %33 = vector.load %arg9[%c0_16, %c0_17] : memref<8x8xf32, #tpu.memory_space<vmem>>, vector<8x1xf32>
    tpu.vector_store %arg9[%c0_16, %c0_17], %21 {strides = array<i32>} : memref<8x8xf32, #tpu.memory_space<vmem>>, vector<8x1xf32>,
    %c0_18 = arith.constant 0 : index
    %c2 = arith.constant 2 : index
    %34 = vector.load %arg9[%c0_18, %c2] : memref<8x8xf32, #tpu.memory_space<vmem>>, vector<8x1xf32>
    %cst_19 = arith.constant 0.000000e+00 : f32
    %35 = vector.broadcast %cst_19 : f32 to vector<8x8xf32>
    %36 = arith.select %17, %14, %35 : vector<8x8xi1>, vector<8x8xf32>
    %cst_20 = arith.constant dense<0.000000e+00> : vector<8xf32>
    %37 = vector.multi_reduction <add>, %36, %cst_20 [1] : vector<8x8xf32> to vector<8xf32>
    %38 = vector.shape_cast %37 : vector<8xf32> to vector<8x1xf32>
    %39 = arith.addf %34, %38 : vector<8x1xf32>
    %c0_21 = arith.constant 0 : index
    %c2_22 = arith.constant 2 : index
    %40 = vector.load %arg9[%c0_21, %c2_22] : memref<8x8xf32, #tpu.memory_space<vmem>>, vector<8x1xf32>
    tpu.vector_store %arg9[%c0_21, %c2_22], %39 {strides = array<i32>} : memref<8x8xf32, #tpu.memory_space<vmem>>, vector<8x1xf32>,
    %c0_23 = arith.constant 0 : index
    %c3 = arith.constant 3 : index
    %41 = vector.load %arg9[%c0_23, %c3] : memref<8x8xf32, #tpu.memory_space<vmem>>, vector<8x1xf32>
    %42 = arith.extui %17 : vector<8x8xi1> to vector<8x8xi32>
    %43 = arith.sitofp %42 : vector<8x8xi32> to vector<8x8xf32>
    %cst_24 = arith.constant dense<0.000000e+00> : vector<8xf32>
    %44 = vector.multi_reduction <add>, %43, %cst_24 [1] : vector<8x8xf32> to vector<8xf32>
    %45 = vector.shape_cast %44 : vector<8xf32> to vector<8x1xf32>
    %46 = arith.addf %41, %45 : vector<8x1xf32>
    %c0_25 = arith.constant 0 : index
    %c3_26 = arith.constant 3 : index
    %47 = vector.load %arg9[%c0_25, %c3_26] : memref<8x8xf32, #tpu.memory_space<vmem>>, vector<8x1xf32>
    tpu.vector_store %arg9[%c0_25, %c3_26], %46 {strides = array<i32>} : memref<8x8xf32, #tpu.memory_space<vmem>>, vector<8x1xf32>,
    %c0_27 = arith.constant 0 : index
    %c4 = arith.constant 4 : index
    %48 = vector.load %arg9[%c0_27, %c4] : memref<8x8xf32, #tpu.memory_space<vmem>>, vector<8x1xf32>
    %cst_28 = arith.constant dense<0.000000e+00> : vector<8xf32>
    %49 = vector.multi_reduction <add>, %15, %cst_28 [1] : vector<8x8xf32> to vector<8xf32>
    %50 = vector.shape_cast %49 : vector<8xf32> to vector<8x1xf32>
    %51 = arith.addf %48, %50 : vector<8x1xf32>
    %c0_29 = arith.constant 0 : index
    %c4_30 = arith.constant 4 : index
    %52 = vector.load %arg9[%c0_29, %c4_30] : memref<8x8xf32, #tpu.memory_space<vmem>>, vector<8x1xf32>
    tpu.vector_store %arg9[%c0_29, %c4_30], %51 {strides = array<i32>} : memref<8x8xf32, #tpu.memory_space<vmem>>, vector<8x1xf32>,
    %c0_i32_31 = arith.constant 0 : i32
    %53 = arith.cmpi eq, %arg1, %c0_i32_31 : i32
    %54 = arith.extui %53 : i1 to i32
    %c0_i32_32 = arith.constant 0 : i32
    %55 = arith.cmpi ne, %54, %c0_i32_32 : i32
    scf.if %55 {
      %c0_33 = arith.constant 0 : index
      %c0_34 = arith.constant 0 : index
      %56 = vector.load %arg9[%c0_33, %c0_34] : memref<8x8xf32, #tpu.memory_space<vmem>>, vector<8x1xf32>
      %c0_35 = arith.constant 0 : index
      %c1_36 = arith.constant 1 : index
      %57 = vector.load %arg9[%c0_35, %c1_36] : memref<8x8xf32, #tpu.memory_space<vmem>>, vector<8x1xf32>
      %58 = math.log %57 : vector<8x1xf32>
      %59 = arith.addf %56, %58 : vector<8x1xf32>
      %c0_37 = arith.constant 0 : index
      %c3_38 = arith.constant 3 : index
      %60 = vector.load %arg9[%c0_37, %c3_38] : memref<8x8xf32, #tpu.memory_space<vmem>>, vector<8x1xf32>
      %61 = arith.mulf %60, %59 : vector<8x1xf32>
      %c0_39 = arith.constant 0 : index
      %c2_40 = arith.constant 2 : index
      %62 = vector.load %arg9[%c0_39, %c2_40] : memref<8x8xf32, #tpu.memory_space<vmem>>, vector<8x1xf32>
      %63 = arith.subf %61, %62 : vector<8x1xf32>
      %c0_41 = arith.constant 0 : index
      %c0_42 = arith.constant 0 : index
      %64 = vector.load %arg7[%c0_41, %c0_42] : memref<8x2xf32, #tpu.memory_space<vmem>>, vector<8x1xf32>
      tpu.vector_store %arg7[%c0_41, %c0_42], %63 {strides = array<i32>} : memref<8x2xf32, #tpu.memory_space<vmem>>, vector<8x1xf32>,
      %c0_43 = arith.constant 0 : index
      %c4_44 = arith.constant 4 : index
      %65 = vector.load %arg9[%c0_43, %c4_44] : memref<8x8xf32, #tpu.memory_space<vmem>>, vector<8x1xf32>
      %c0_45 = arith.constant 0 : index
      %c1_46 = arith.constant 1 : index
      %66 = vector.load %arg7[%c0_45, %c1_46] : memref<8x2xf32, #tpu.memory_space<vmem>>, vector<8x1xf32>
      tpu.vector_store %arg7[%c0_45, %c1_46], %65 {strides = array<i32>} : memref<8x2xf32, #tpu.memory_space<vmem>>, vector<8x1xf32>,
    } else {
    }
    return
  }
  func.func @transform_0(%arg0: i32, %arg1: i32) -> i32 {
    %c0_i32 = arith.constant 0 : i32
    %c0_i32_0 = arith.constant 0 : i32
    return %c0_i32 : i32
  }
  func.func @transform_1(%arg0: i32, %arg1: i32) -> i32 {
    %c0_i32 = arith.constant 0 : i32
    %c0_i32_0 = arith.constant 0 : i32
    return %c0_i32 : i32
  }
  func.func @transform_2(%arg0: i32, %arg1: i32) -> (i32, i32) {
    %c0_i32 = arith.constant 0 : i32
    %c0_i32_0 = arith.constant 0 : i32
    return %arg0, %c0_i32 : i32, i32
  }
  func.func @transform_3(%arg0: i32, %arg1: i32) -> (i32, i32) {
    %c0_i32 = arith.constant 0 : i32
    %c0_i32_0 = arith.constant 0 : i32
    return %arg1, %c0_i32 : i32, i32
  }
  func.func @transform_4(%arg0: i32, %arg1: i32) -> (i32, i32) {
    %c0_i32 = arith.constant 0 : i32
    return %arg0, %arg1 : i32, i32
  }
  func.func @transform_5(%arg0: i32, %arg1: i32) -> (i32, i32) {
    %c0_i32 = arith.constant 0 : i32
    %c0_i32_0 = arith.constant 0 : i32
    return %arg0, %c0_i32 : i32, i32
  }
}

</mosaic_0001>

<llo_original>
// kernel: tpu_custom_call.1
$region0: #{tpu_custom_call.1}
  #allocation0 [shape = 'u32[]', space=smem, size = 0x4, offset = 0x4, fixed_abs, tag = 'smem constant byte address 0x4 - core index']
  #allocation1 [shape = 'u32[144,128]{1,0:T(1,128)}', space=vmem, size = 0x12000, scoped, tag = 'internal scratch']
  #allocation2 [shape = 'bf16[8,512]{1,0:T(8,128)(2,1)}', space=vmem, size = 0x2000, scoped, tag = 'scratch operand']
  #allocation3 [shape = 'f32[8,8]{1,0:T(8,128)}', space=vmem, size = 0x1000, scoped, tag = 'scratch operand']
  #allocation4 [shape = 'f32[1]{0:T(128)S(6)}', space=smem, size = 0x200, scoped, tag = 'scoped memory for tpu_custom_call.1']
  #allocation5 [shape = 's32[1]{0:T(128)S(6)}', space=smem, size = 0x200, scoped, tag = 'scoped memory for tpu_custom_call.1']
  %s0 = inlined_call_operand.<no memory space> [shape: f32[1], index: 0, kind: input, shape index: {}]
  %s1 = inlined_call_operand.<no memory space> [shape: s32[1], index: 1, kind: input, shape index: {}]
  %s2 = inlined_call_operand.hbm [shape: f32[8,512], index: 2, kind: input, shape index: {}]
  %s3 = inlined_call_operand.hbm [shape: f32[8,512], index: 3, kind: input, shape index: {}]
  %s4 = inlined_call_operand.hbm [shape: f32[8,8], index: 4, kind: input, shape index: {}]
  %s5 = inlined_call_operand.vmem [shape: f32[8,2], index: 5, kind: output, shape index: {}]
  %s6 = sld [smem:[#allocation0]]
  $region50: #{tpu_custom_call.1} parent=0
    _
  %s8 = ssub.s32 1, %s6
  %s9 = scalar_select 0, %s8, %s6
  %10 = sst [smem:[#allocation4]] %s0
  %11 = sst [smem:[#allocation5]] %s1
  $region1: #{tpu_custom_call.1} parent=0
    #allocation6 [shape = 'u8[16384]{0}', space=vmem, size = 0x4000, scoped, tag = 'input window, operand 2, single buffered']
    #allocation7 [shape = 's32[1]{0}', space=sflag, size = 0x4, scoped, tag = 'scoped memory for tpu_custom_call.1']
    #allocation8 [shape = 'u8[16384]{0}', space=vmem, size = 0x4000, scoped, tag = 'input window, operand 3, single buffered']
    #allocation9 [shape = 's32[1]{0}', space=sflag, size = 0x4, scoped, tag = 'scoped memory for tpu_custom_call.1']
    #allocation10 [shape = 'u8[4096]{0}', space=vmem, size = 0x1000, scoped, tag = 'input window, operand 4, single buffered']
    %12 = vsyncpa [#allocation7], 0
    %13 = vsyncpa [#allocation9], 0
    // Predicated region
    $region2: #{tpu_custom_call.1} parent=1 // pred_check
      _
    $region3: #{tpu_custom_call.1} parent=1 // pred_check_branch
      %15 = sbr.rel (0) target = $region5
    $region4: #{tpu_custom_call.1} parent=1 // pred_region
      _
    $region5: #{tpu_custom_call.1} parent=1 // pred_fallthru
      _
    // Predicated region
    $region6: #{tpu_custom_call.1} parent=1 // pred_check
      _
    $region7: #{tpu_custom_call.1} parent=1 // pred_check_branch
      %17 = sbr.rel (0) target = $region9
    $region8: #{tpu_custom_call.1} parent=1 // pred_region
      _
    $region9: #{tpu_custom_call.1} parent=1 // pred_fallthru
      _
    // Predicated region
    $region10: #{tpu_custom_call.1} parent=1 // pred_check
      _
    $region11: #{tpu_custom_call.1} parent=1 // pred_check_branch
      %19 = sbr.rel (0) target = $region13
    $region12: #{tpu_custom_call.1} parent=1 // pred_region
      %s21 = ssub.s32 512, 512
      %22 = vsyncadd [#allocation7], %s21
      %s24 = sshll.u32 [#allocation6], 4
      %s25 = int_to_ptr.vmem [resolvable:$true] %s24
      %27 = dma.hbm_to_vmem [thread:$0]  %s2, 512, %s25, [#allocation7]
    $region13: #{tpu_custom_call.1} parent=1 // pred_fallthru
      _
    // Predicated region
    $region14: #{tpu_custom_call.1} parent=1 // pred_check
      _
    $region15: #{tpu_custom_call.1} parent=1 // pred_check_branch
      %29 = sbr.rel (0) target = $region17
    $region16: #{tpu_custom_call.1} parent=1 // pred_region
      %s31 = ssub.s32 512, 512
      %32 = vsyncadd [#allocation9], %s31
      %s34 = sshll.u32 [#allocation8], 4
      %s35 = int_to_ptr.vmem [resolvable:$true] %s34
      %37 = dma.hbm_to_vmem [thread:$0]  %s3, 512, %s35, [#allocation9]
    $region17: #{tpu_custom_call.1} parent=1 // pred_fallthru
      _
    // Predicated region
    $region18: #{tpu_custom_call.1} parent=1 // pred_check
      _
    $region19: #{tpu_custom_call.1} parent=1 // pred_check_branch
      %39 = sbr.rel (0) target = $region21
    $region20: #{tpu_custom_call.1} parent=1 // pred_region
      %s41 = ssub.s32 128, 128
      %42 = vsyncadd [#allocation9], %s41
      %s44 = sshll.u32 [#allocation10], 4
      %s45 = int_to_ptr.vmem [resolvable:$true] %s44
      %47 = dma.hbm_to_vmem [thread:$0]  %s4, 128, %s45, [#allocation9]
    $region21: #{tpu_custom_call.1} parent=1 // pred_fallthru
      _
    // Predicated region
    $region22: #{tpu_custom_call.1} parent=1 // pred_check
      _
    $region23: #{tpu_custom_call.1} parent=1 // pred_check_branch
      %49 = sbr.rel (0) target = $region25
    $region24: #{tpu_custom_call.1} parent=1 // pred_region
      %50 = dma.done [#allocation7], 512
    $region25: #{tpu_custom_call.1} parent=1 // pred_fallthru
      _
    // Predicated region
    $region26: #{tpu_custom_call.1} parent=1 // pred_check
      _
    $region27: #{tpu_custom_call.1} parent=1 // pred_check_branch
      %52 = sbr.rel (0) target = $region29
    $region28: #{tpu_custom_call.1} parent=1 // pred_region
      %53 = dma.done [#allocation9], 512
    $region29: #{tpu_custom_call.1} parent=1 // pred_fallthru
      _
    // Predicated region
    $region30: #{tpu_custom_call.1} parent=1 // pred_check
      _
    $region31: #{tpu_custom_call.1} parent=1 // pred_check_branch
      %55 = sbr.rel (0) target = $region33
    $region32: #{tpu_custom_call.1} parent=1 // pred_region
      %56 = dma.done [#allocation9], 128
    $region33: #{tpu_custom_call.1} parent=1 // pred_fallthru
      _
    %p58 = scmp.eq.s32.totalorder 0, 0
    // Predicated region
    $region34: #{tpu_custom_call.1} parent=1 // pred_check
      %p59 = pneg %p58
    $region35: #{tpu_custom_call.1} parent=1 // pred_check_branch
      %61 = sbr.rel (%p59) target = $region37
    $region36: #{tpu_custom_call.1} parent=1 // pred_region
      %vm62 = vcmask 64512
      %63 = vst.msk [vmem:[#allocation3] sm:$0xff] %vm62, 0.0
      %vm64 = vcmask 7168
      %65 = vst.msk [vmem:[#allocation3] sm:$0xff] %vm64, -inf
      %v66 = vld [vmem:[#allocation6] sm:$0xff]
      %v67 = vld [vmem:[#allocation6 + $0x8] sm:$0xff]
      %v68 = vld [vmem:[#allocation6 + $0x10] sm:$0xff]
      %v69 = vld [vmem:[#allocation6 + $0x18] sm:$0xff]
      %v70 = vmul.f32 %v66, %v66
      %v71 = vmul.f32 %v67, %v67
      %v72 = vmul.f32 %v68, %v68
      %v73 = vmul.f32 %v69, %v69
      %v74 = vadd.f32 %v70, %v71
      %v75 = vadd.f32 %v74, %v72
      %v76 = vadd.f32 %v75, %v73
      %77 = vadd.xlane.f32.xlu0 %v76
      %v78 = vpop.xlane.xlu0 %77
      %v79 = vadd.f32 %v78, 1e-12
      %v80 = vrsqrt.pop %v79
      %s81 = sld [smem:[#allocation4]]
      %v82 = vstv %s81
      %v83 = vmul.f32 %v82, %v80
      %v84 = vmul.f32 %v66, %v83
      %v85 = vmul.f32 %v67, %v83
      %v86 = vmul.f32 %v68, %v83
      %v87 = vmul.f32 %v69, %v83
      %v88 = vpack.c.bf16 %v84, %v84
      %v89 = vpack.c.bf16 %v85, %v85
      %v90 = vpack.c.bf16 %v86, %v86
      %v91 = vpack.c.bf16 %v87, %v87
      %v96 = vunpack.c.l.b16 %v88
      %v97 = vunpack.c.l.b16 %v89
      %v98 = vunpack.c.l.b16 %v90
      %v99 = vunpack.c.l.b16 %v91
      %v100 = vpack.c.b16 %v97, %v96
      %v101 = vpack.c.b16 %v99, %v98
      %104 = vst [vmem:[#allocation2] sm:$0xff] %v100
      %105 = vst [vmem:[#allocation2 + $0x8] sm:$0xff] %v101
    $region37: #{tpu_custom_call.1} parent=1 // pred_fallthru
      _
    %v106 = vld [vmem:[#allocation8] sm:$0xff]
    %v107 = vld [vmem:[#allocation8 + $0x8] sm:$0xff]
    %v108 = vld [vmem:[#allocation8 + $0x10] sm:$0xff]
    %v109 = vld [vmem:[#allocation8 + $0x18] sm:$0xff]
    %v110 = vmul.f32 %v106, %v106
    %v111 = vmul.f32 %v107, %v107
    %v112 = vmul.f32 %v108, %v108
    %v113 = vmul.f32 %v109, %v109
    %v114 = vadd.f32 %v110, %v111
    %v115 = vadd.f32 %v114, %v112
    %v116 = vadd.f32 %v115, %v113
    %117 = vadd.xlane.f32.xlu0 %v116
    %v118 = vpop.xlane.xlu0 %117
    %v119 = vadd.f32 %v118, 1e-12
    %v120 = vrsqrt.pop %v119
    %v121 = vmul.f32 %v106, %v120
    %v122 = vmul.f32 %v107, %v120
    %v123 = vmul.f32 %v108, %v120
    %v124 = vmul.f32 %v109, %v120
    %v125 = vpack.c.bf16 %v121, %v121
    %v126 = vpack.c.bf16 %v122, %v122
    %v127 = vpack.c.bf16 %v123, %v123
    %v128 = vpack.c.bf16 %v124, %v124
    %v129 = vld [vmem:[#allocation2] sm:$0xff]
    %v130 = vld [vmem:[#allocation2 + $0x8] sm:$0xff]
    %v133 = vunpack.c.l.b16 %v129
    %v134 = vunpack.c.h.b16 %v129
    %v135 = vunpack.c.l.b16 %v130
    %v136 = vunpack.c.h.b16 %v130
    %v137 = vpack.c.b16 %v133, %v133
    %v138 = vpack.c.b16 %v134, %v134
    %v139 = vpack.c.b16 %v135, %v135
    %v140 = vpack.c.b16 %v136, %v136
    %145 = vmatprep.subr.bf16.mxu0 0
    %146 = vmatpush1.bf16.xpose.msra.mxu0 0
    %147 = vmatprep.subr.bf16.mxu0 0
    %148 = vmatpush1.bf16.xpose.msra.mxu0 0
    %149 = vmatprep.subr.bf16.mxu0 0
    %150 = vmatpush1.bf16.xpose.msra.mxu0 0
    %151 = vmatprep.subr.bf16.mxu0 0
    %152 = vmatpush1.bf16.xpose.msra.mxu0 0
    %153 = vmatprep.subr.bf16.mxu0 0
    %154 = vmatpush1.bf16.xpose.msra.mxu0 0
    %155 = vmatprep.subr.bf16.mxu0 0
    %156 = vmatpush1.bf16.xpose.msra.mxu0 0
    %157 = vmatprep.subr.bf16.mxu0 0
    %158 = vmatpush1.bf16.xpose.msra.mxu0 0
    %159 = vmatprep.subr.bf16.mxu0 %v126
    %160 = vmatpush1.bf16.xpose.msra.mxu0 %v125
    %161 = vmatprep.subr.bf16.mxu0 0
    %162 = vmatpush2.bf16.xpose.msra.mxu0 0
    %163 = vmatprep.subr.bf16.mxu0 0
    %164 = vmatpush2.bf16.xpose.msra.mxu0 0
    %165 = vmatprep.subr.bf16.mxu0 0
    %166 = vmatpush2.bf16.xpose.msra.mxu0 0
    %167 = vmatprep.subr.bf16.mxu0 0
    %168 = vmatpush2.bf16.xpose.msra.mxu0 0
    %169 = vmatprep.subr.bf16.mxu0 0
    %170 = vmatpush2.bf16.xpose.msra.mxu0 0
    %171 = vmatprep.subr.bf16.mxu0 0
    %172 = vmatpush2.bf16.xpose.msra.mxu0 0
    %173 = vmatprep.subr.bf16.mxu0 0
    %174 = vmatpush2.bf16.xpose.msra.mxu0 0
    %175 = vmatprep.subr.bf16.mxu0 0
    %176 = vmatpush2.bf16.xpose.msra.mxu0 0
    %177 = vmatprep.mubr.bf16.mxu0 %v138
    %178 = vmatmul.mubr.bf16.gmra.mxu0 %v137
    %v179 = vpop.f32.mrf.mxu0
    %v180 = vadd.f32 0.0, %v179
    %v181 = vpop.f32.mrf.mxu0
    %v182 = vpop.f32.mrf.mxu0
    %v183 = vpop.f32.mrf.mxu0
    %184 = vdwg.mxu0
    %185 = vmatprep.subr.bf16.mxu0 0
    %186 = vmatpush1.bf16.xpose.msra.mxu0 0
    %187 = vmatprep.subr.bf16.mxu0 0
    %188 = vmatpush1.bf16.xpose.msra.mxu0 0
    %189 = vmatprep.subr.bf16.mxu0 0
    %190 = vmatpush1.bf16.xpose.msra.mxu0 0
    %191 = vmatprep.subr.bf16.mxu0 0
    %192 = vmatpush1.bf16.xpose.msra.mxu0 0
    %193 = vmatprep.subr.bf16.mxu0 0
    %194 = vmatpush1.bf16.xpose.msra.mxu0 0
    %195 = vmatprep.subr.bf16.mxu0 0
    %196 = vmatpush1.bf16.xpose.msra.mxu0 0
    %197 = vmatprep.subr.bf16.mxu0 0
    %198 = vmatpush1.bf16.xpose.msra.mxu0 0
    %199 = vmatprep.subr.bf16.mxu0 %v128
    %200 = vmatpush1.bf16.xpose.msra.mxu0 %v127
    %201 = vmatprep.subr.bf16.mxu0 0
    %202 = vmatpush2.bf16.xpose.msra.mxu0 0
    %203 = vmatprep.subr.bf16.mxu0 0
    %204 = vmatpush2.bf16.xpose.msra.mxu0 0
    %205 = vmatprep.subr.bf16.mxu0 0
    %206 = vmatpush2.bf16.xpose.msra.mxu0 0
    %207 = vmatprep.subr.bf16.mxu0 0
    %208 = vmatpush2.bf16.xpose.msra.mxu0 0
    %209 = vmatprep.subr.bf16.mxu0 0
    %210 = vmatpush2.bf16.xpose.msra.mxu0 0
    %211 = vmatprep.subr.bf16.mxu0 0
    %212 = vmatpush2.bf16.xpose.msra.mxu0 0
    %213 = vmatprep.subr.bf16.mxu0 0
    %214 = vmatpush2.bf16.xpose.msra.mxu0 0
    %215 = vmatprep.subr.bf16.mxu0 0
    %216 = vmatpush2.bf16.xpose.msra.mxu0 0
    %217 = vmatprep.mubr.bf16.mxu0 %v140
    %218 = vmatmul.mubr.bf16.gmra.mxu0 %v139
    %v219 = vpop.f32.mrf.mxu0
    %v220 = vadd.f32 %v180, %v219
    %v221 = vpop.f32.mrf.mxu0
    %v222 = vpop.f32.mrf.mxu0
    %v223 = vpop.f32.mrf.mxu0
    %224 = vdwg.mxu0
    %v225 = vld [vmem:[#allocation10] sm:$0xff]
    %vm226 = vcmp.ne.f32.partialorder %v225, 0.0
    %v227 = vld [vmem:[#allocation3] sm:$0xff]
    %vm228 = vcmask 64512
    %v229 = vsel %vm228, %v220, -inf
    %230 = vmax.xlane.f32.xlu0 %v229
    %v231 = vpop.xlane.xlu0 %230
    %v232 = vmax.f32 %v227, %v231
    %234 = vset.pattern.permute.xlu0 0
    %235 = vperm.xlu0 %234, %v232
    %v236 = vpop.permute.xlu0 %235
    %v238 = vsub.f32 %v220, %v236
    %v239 = vmul.f32 %v238, 1.442695
    %v240 = vpow.pop %v239
    %v241 = vsub.f32 %v227, %v232
    %v242 = vmul.f32 %v241, 1.442695
    %v243 = vpow.pop %v242
    %245 = vrot.lane.b32.xlu0 %v227, 127
    %v246 = vpop.permute.xlu0 %245
    %v248 = vmul.f32 %v243, %v246
    %v249 = vsel %vm228, %v240, 0.0
    %250 = vadd.xlane.f32.xlu0 %v249
    %v251 = vpop.xlane.xlu0 %250
    %v252 = vadd.f32 %v248, %v251
    %254 = vrot.lane.b32.xlu0 %v252, 1
    %v255 = vpop.permute.xlu0 %254
    %vm257 = vcmask 15368
    %258 = vst.msk [vmem:[#allocation3] sm:$0xff] %vm257, %v255
    %vm259 = vcmask 7168
    %260 = vst.msk [vmem:[#allocation3] sm:$0xff] %vm259, %v232
    %v261 = vld [vmem:[#allocation3] sm:$0xff]
    %v262 = vsel %vm226, %v220, 0.0
    %v263 = vsel %vm228, %v262, 0.0
    %264 = vadd.xlane.f32.xlu0 %v263
    %v265 = vpop.xlane.xlu0 %264
    %v266 = vadd.f32 %v261, %v265
    %vm267 = vcmask 23568
    %268 = vst.msk [vmem:[#allocation3] sm:$0xff] %vm267, %v266
    %v269 = vld [vmem:[#allocation3] sm:$0xff]
    %v270 = vsel %vm226, 1, 0
    %v271 = vcvt.s32.f32 %v270
    %v272 = vsel %vm228, %v271, 0.0
    %273 = vadd.xlane.f32.xlu0 %v272
    %v274 = vpop.xlane.xlu0 %273
    %v275 = vadd.f32 %v269, %v274
    %vm276 = vcmask 31768
    %277 = vst.msk [vmem:[#allocation3] sm:$0xff] %vm276, %v275
    %v278 = vld [vmem:[#allocation3] sm:$0xff]
    %v279 = vsel %vm228, %v225, 0.0
    %280 = vadd.xlane.f32.xlu0 %v279
    %v281 = vpop.xlane.xlu0 %280
    %v282 = vadd.f32 %v278, %v281
    %vm283 = vcmask 39968
    %284 = vst.msk [vmem:[#allocation3] sm:$0xff] %vm283, %v282
    // Predicated region
    $region38: #{tpu_custom_call.1} parent=1 // pred_check
      %p285 = pneg %p58
    $region39: #{tpu_custom_call.1} parent=1 // pred_check_branch
      %287 = sbr.rel (%p285) target = $region41
    $region40: #{tpu_custom_call.1} parent=1 // pred_region
      %v288 = vld [vmem:[#allocation3] sm:$0xff]
      %v289 = vlog2.pop %v288
      %v290 = vmul.f32 %v289, 0.6931472
      %292 = vrot.lane.b32.xlu0 %v290, 127
      %v293 = vpop.permute.xlu0 %292
      %v295 = vadd.f32 %v288, %v293
      %297 = vrot.lane.b32.xlu0 %v295, 3
      %v298 = vpop.permute.xlu0 %297
      %v300 = vmul.f32 %v288, %v298
      %302 = vrot.lane.b32.xlu0 %v288, 1
      %v303 = vpop.permute.xlu0 %302
      %v305 = vsub.f32 %v300, %v303
      %307 = vrot.lane.b32.xlu0 %v305, 125
      %v308 = vpop.permute.xlu0 %307
      %310 = vst.msk [vmem:[%s5] sm:$0xff] %vm259, %v308
      %v311 = vld [vmem:[#allocation3] sm:$0xff]
      %313 = vrot.lane.b32.xlu0 %v311, 125
      %v314 = vpop.permute.xlu0 %313
      %316 = vst.msk [vmem:[%s5] sm:$0xff] %vm257, %v314
    $region41: #{tpu_custom_call.1} parent=1 // pred_fallthru
      _
    // Predicated region
    $region42: #{tpu_custom_call.1} parent=1 // pred_check
      _
    $region43: #{tpu_custom_call.1} parent=1 // pred_check_branch
      %318 = sbr.rel (0) target = $region45
    $region44: #{tpu_custom_call.1} parent=1 // pred_region
      _
    $region45: #{tpu_custom_call.1} parent=1 // pred_fallthru
      _
    // Predicated region
    $region46: #{tpu_custom_call.1} parent=1 // pred_check
      _
    $region47: #{tpu_custom_call.1} parent=1 // pred_check_branch
      %320 = sbr.rel (0) target = $region49
    $region48: #{tpu_custom_call.1} parent=1 // pred_region
      _
    $region49: #{tpu_custom_call.1} parent=1 // pred_fallthru
      _
    %321 = vsyncpa [#allocation7], 1
    %322 = vsyncpa [#allocation9], 1

</llo_original>
